<compile_context>
chip_gen: v7x
topology: tpu7x:2x2x1
jax: 0.10.0
libtpu: 0.0.40
codegen_flags: <defaults>
</compile_context>

<pallas_src>
import functools

import jax
import jax.numpy as jnp
from jax import lax
from jax.experimental import pallas as pl
from jax.experimental.pallas import tpu as pltpu


# ----------------------------------------------------------------------------
# helpers
# ----------------------------------------------------------------------------
def _round_up(n, m):
    return ((n + m - 1) // m) * m


def _choose_tile(dim, max_tile):
    """Largest multiple of 128 that divides `dim` and is <= max_tile."""
    for cand in range(max_tile, 127, -128):
        if dim % cand == 0:
            return cand
    return min(dim, 128)


def _vmem_limit(request_bytes):
    """Per-generation VMEM budget: leave headroom for Mosaic-internal scratch."""
    cap = 128 << 20
    try:
        cap = int(getattr(pltpu.get_tpu_info(), "vmem_capacity_bytes", cap))
    except Exception:
        pass
    cap = int(cap * 0.85)            # ~54 MiB on v7x (64 MiB), ~108 MiB on v5e/v6e
    return max(min(int(request_bytes), cap), min(32 << 20, cap))


# contraction dimension numbers
_CN = (((1,), (0,)), ((), ()))       # canonical  A @ B
_NT = (((1,), (1,)), ((), ()))       # MXU-native A @ B^T


# ----------------------------------------------------------------------------
# Small-problem path: one un-gridded kernel, full arrays resident in VMEM.
# ----------------------------------------------------------------------------
def _csm_small_kernel(x_ref, w_ref, pdw_t_ref, pdb_ref, p_ref, pt_ref, mask_ref, out_ref):
    cdt = p_ref.dtype
    f32 = jnp.float32
    # w_proj = weights @ pd_w^T + pd_b      (pd_w^T pre-materialized -> canonical)
    w_proj = lax.dot_general(w_ref[...], pdw_t_ref[...], _CN, preferred_element_type=f32)
    w_proj = (w_proj + pdb_ref[...]).astype(cdt)
    # w_prime = P^T @ w_proj @ P            (P^T pre-materialized -> canonical)
    tmp = lax.dot_general(pt_ref[...], w_proj, _CN, preferred_element_type=f32)
    w_prime = lax.dot_general(tmp.astype(cdt), p_ref[...], _CN, preferred_element_type=f32)
    masked = (w_prime * jax.nn.sigmoid(mask_ref[...])).astype(cdt)
    # out_b = (P @ masked @ P^T @ x_b)^T == x_b^T @ P @ masked^T @ P^T
    xp = lax.dot_general(x_ref[...], p_ref[...], _CN, preferred_element_type=f32)
    t = lax.dot_general(xp.astype(cdt), masked, _NT, preferred_element_type=f32)
    out_ref[...] = lax.dot_general(t.astype(cdt), pt_ref[...], _CN, preferred_element_type=f32)


@jax.jit
def _csm_forward_small(x, weights, pdw_t, pdb, P, Pt, mask):
    B, D = x.shape
    cdt = P.dtype
    out = pl.pallas_call(
        _csm_small_kernel,
        out_shape=jax.ShapeDtypeStruct((B, D), jnp.float32),
    )(x.astype(cdt), weights.astype(cdt), pdw_t, pdb, P, Pt, mask)
    return out.astype(x.dtype)


# ----------------------------------------------------------------------------
# Phase 1 (large path): K-tiled reduction + finalize producing
#   F = P @ (sigmoid(mask) * (P^T @ (weights @ pd_w^T + pd_b) @ P))^T @ P^T
# Accumulation happens directly in the resident f32 output block.
# ----------------------------------------------------------------------------
def _csm_precompute_kernel(w_ref, pdw_t_ref, pdb_ref, p_ref, pt_ref, mask_ref, f_ref):
    f32 = jnp.float32
    k = pl.program_id(0)

    @pl.when(k == 0)
    def _init():
        f_ref[...] = jnp.zeros_like(f_ref)

    # w_proj partial sum (bias added exactly once, in the finalize).
    f_ref[...] += lax.dot_general(w_ref[...], pdw_t_ref[...], _CN,
                                  preferred_element_type=f32)

    @pl.when(k == pl.num_programs(0) - 1)
    def _finalize():
        cdt = p_ref.dtype
        P = p_ref[...]
        Pt = pt_ref[...]
        w_proj = (f_ref[...] + pdb_ref[...]).astype(cdt)
        # w_prime = P^T @ w_proj @ P  (all canonical MXU feeds, no XLU transpose)
        tmp = lax.dot_general(Pt, w_proj, _CN, preferred_element_type=f32)
        w_prime = lax.dot_general(tmp.astype(cdt), P, _CN, preferred_element_type=f32)
        masked = (w_prime * jax.nn.sigmoid(mask_ref[...])).astype(cdt)
        # F = P @ masked^T @ P^T  -> Phase 2 is a single canonical matmul out = X @ F.
        a = lax.dot_general(P, masked, _NT, preferred_element_type=f32)      # P @ masked^T
        f_ref[...] = lax.dot_general(a.astype(cdt), Pt, _CN,                 # ... @ P^T
                                     preferred_element_type=f32)
        # TODO(synk): for very large Dp (>~2048) tile this finalize over (i, j) output
        # blocks and single-buffer the grid-invariant P/P^T/mask operands
        # (pl.Buffered(1) / memory_space=pl.ANY) to stay under v7x's 64 MiB VMEM.


# ----------------------------------------------------------------------------
# Phase 2 (large path): out = X @ F, gridded (parallel) over batch and columns.
# ----------------------------------------------------------------------------
def _csm_apply_kernel(x_ref, f_ref, out_ref):
    out_ref[...] = lax.dot_general(
        x_ref[...], f_ref[...].astype(x_ref.dtype),
        dimension_numbers=_CN, preferred_element_type=jnp.float32)


@jax.jit
def _csm_forward_two_phase(x, weights, pdw_t, pdb, P, Pt, mask):
    B, D = x.shape
    Din = weights.shape[1]
    Dinp, Dp = pdw_t.shape
    cdt = P.dtype
    f32 = jnp.float32
    isz = jnp.dtype(cdt).itemsize

    # Per-call padding of the per-call inputs only (params were padded once at prepare).
    tb = min(256, _round_up(B, 8))
    Bp = _round_up(B, tb)
    xp = jnp.zeros((Bp, Dp), cdt).at[:B, :D].set(x.astype(cdt))
    wp = jnp.zeros((Dp, Dinp), cdt).at[:D, :Din].set(weights.astype(cdt))

    tk = _choose_tile(Dinp, 512 if isz <= 2 else 256)
    n_k = Dinp // tk

    p1_need = (2 * 2 * Dp * tk * isz          # weights / pd_w^T tiles (double buffered)
               + 2 * 2 * Dp * Dp * isz        # P, P^T
               + 2 * Dp * Dp * 4              # mask (f32)
               + 2 * Dp * Dp * 4              # resident F / accumulator
               + 4 * Dp * Dp * 4              # finalize temporaries
               + (2 << 20))
    F = pl.pallas_call(
        _csm_precompute_kernel,
        out_shape=jax.ShapeDtypeStruct((Dp, Dp), f32),
        grid_spec=pltpu.PrefetchScalarGridSpec(
            num_scalar_prefetch=0,
            grid=(n_k,),
            in_specs=[
                pl.BlockSpec((Dp, tk), lambda k: (0, k)),   # weights  (K-tiled)
                pl.BlockSpec((tk, Dp), lambda k: (k, 0)),   # pd_w^T   (K-tiled)
                pl.BlockSpec((1, Dp), lambda k: (0, 0)),    # pd_b
                pl.BlockSpec((Dp, Dp), lambda k: (0, 0)),   # P
                pl.BlockSpec((Dp, Dp), lambda k: (0, 0)),   # P^T
                pl.BlockSpec((Dp, Dp), lambda k: (0, 0)),   # spectral mask
            ],
            out_specs=pl.BlockSpec((Dp, Dp), lambda k: (0, 0)),
        ),
        compiler_params=pltpu.CompilerParams(
            dimension_semantics=("arbitrary",),
            vmem_limit_bytes=_vmem_limit(p1_need),
        ),
        cost_estimate=pl.CostEstimate(
            flops=2 * Dp * Dinp * Dp + 8 * Dp ** 3 + 2 * Dp * Dp,
            transcendentals=Dp * Dp,
            bytes_accessed=2 * Dp * Dinp * isz + 3 * Dp * Dp * isz + Dp * Dp * 4 + Dp * 4,
        ),
    )(wp, pdw_t, pdb, P, Pt, mask)

    tn = _choose_tile(Dp, 512)
    n_b, n_n = Bp // tb, Dp // tn
    p2_need = (2 * tb * Dp * isz + 2 * Dp * tn * 4 + Dp * tn * isz
               + 2 * tb * tn * 4 + (2 << 20))
    out_p = pl.pallas_call(
        _csm_apply_kernel,
        out_shape=jax.ShapeDtypeStruct((Bp, Dp), f32),
        grid_spec=pltpu.PrefetchScalarGridSpec(
            num_scalar_prefetch=0,
            grid=(n_b, n_n),
            in_specs=[
                pl.BlockSpec((tb, Dp), lambda b, j: (b, 0)),   # x tile (resident over j)
                pl.BlockSpec((Dp, tn), lambda b, j: (0, j)),   # F column block
            ],
            out_specs=pl.BlockSpec((tb, tn), lambda b, j: (b, j)),
        ),
        compiler_params=pltpu.CompilerParams(
            dimension_semantics=("parallel", "parallel"),
            vmem_limit_bytes=_vmem_limit(p2_need),
        ),
        cost_estimate=pl.CostEstimate(
            flops=2 * Bp * Dp * Dp,
            transcendentals=0,
            bytes_accessed=Bp * Dp * isz + Dp * Dp * 4 + Bp * Dp * 4,
        ),
    )(xp, F)

    return out_p[:B, :D].astype(x.dtype)


# ----------------------------------------------------------------------------
# Module-like wrapper: parameters are preprocessed once (hoisted out of the
# per-call path); __call__(x, weights) mirrors CSMFusionLayer.forward.
# ----------------------------------------------------------------------------
class CSMFusionTPU:
    _SMALL_BYTES = 4 << 20   # below this the single-kernel path is used

    def __init__(self, pd_w, pd_b, P, spectral_mask, *,
                 compute_dtype=jnp.bfloat16, force_two_phase=False):
        D, Din = pd_w.shape
        assert P.shape == (D, D) and spectral_mask.shape == (D, D)
        self.dim_out, self.dim_in = D, Din
        f32 = jnp.float32
        approx_bytes = 4 * (2 * D * Din + 4 * D * D)
        self.small = (not force_two_phase) and approx_bytes <= self._SMALL_BYTES

        Pf = jnp.asarray(P, f32)
        if self.small:
            self.pdw_t = jnp.asarray(pd_w, f32).T.astype(compute_dtype)      # [Din, D]
            self.pdb = jnp.asarray(pd_b, f32).reshape(1, D)
            self.P = Pf.astype(compute_dtype)
            self.Pt = Pf.T.astype(compute_dtype)
            self.mask = jnp.asarray(spectral_mask, f32)
        else:
            Dp = _round_up(max(D, 128), 128)
            Dinp = _round_up(max(Din, 128), 128)
            self.pdw_t = (jnp.zeros((Dinp, Dp), f32)
                          .at[:Din, :D].set(jnp.asarray(pd_w, f32).T)
                          .astype(compute_dtype))
            self.pdb = jnp.zeros((1, Dp), f32).at[0, :D].set(
                jnp.asarray(pd_b, f32).reshape(-1))
            self.P = jnp.zeros((Dp, Dp), f32).at[:D, :D].set(Pf).astype(compute_dtype)
            self.Pt = jnp.zeros((Dp, Dp), f32).at[:D, :D].set(Pf.T).astype(compute_dtype)
            self.mask = jnp.zeros((Dp, Dp), f32).at[:D, :D].set(
                jnp.asarray(spectral_mask, f32))

        (self.pdw_t, self.pdb, self.P, self.Pt, self.mask) = jax.device_put(
            (self.pdw_t, self.pdb, self.P, self.Pt, self.mask))

    def __call__(self, x, weights):
        fwd = _csm_forward_small if self.small else _csm_forward_two_phase
        return fwd(x, weights, self.pdw_t, self.pdb, self.P, self.Pt, self.mask)


# ----------------------------------------------------------------------------
# Pure-JAX reference (matches the PyTorch forward; debug prints omitted)
# ----------------------------------------------------------------------------
def reference(x, weights, pd_w, pd_b, P, mask):
    w_proj = weights @ pd_w.T + pd_b
    w_prime = P.T @ w_proj @ P
    masked = w_prime * jax.nn.sigmoid(mask)
    x_prime = x @ P                                  # rows are (P^T x_b)^T
    return (x_prime @ masked.T) @ P.T                # rows are (P masked P^T x_b)^T


if __name__ == "__main__":
    # Small shapes consistent with the module: x [B x tts_dim], weights [tts_dim x llama_dim].
    B, dim_out, dim_in = 8, 32, 64

    key = jax.random.PRNGKey(0)
    k_x, k_w, k_tts, k_llama, k_pdw, k_pdb = jax.random.split(key, 6)

    # Deterministic synthetic parameter init (mirrors __init__ shapes; Q unused in forward).
    W0_tts = jax.random.normal(k_tts, (dim_out, dim_out), jnp.float32)
    W0_llama = jax.random.normal(k_llama, (dim_in, dim_in), jnp.float32)
    U_tts, _, _ = jnp.linalg.svd(W0_tts, full_matrices=False)
    _, _, Vt_llama = jnp.linalg.svd(W0_llama, full_matrices=False)
    P = U_tts
    spectral_mask = jnp.ones((dim_out, dim_out), jnp.float32)
    pd_w = jax.random.normal(k_pdw, (dim_out, dim_in), jnp.float32) / jnp.sqrt(dim_in)
    pd_b = jax.random.normal(k_pdb, (dim_out,), jnp.float32) * 0.01

    x = jax.random.normal(k_x, (B, dim_out), jnp.float32)
    weights = jax.random.normal(k_w, (dim_out, dim_in), jnp.float32)

    ref = reference(x, weights, pd_w, pd_b, P, spectral_mask)

    # f32 compute: matches the PyTorch/JAX reference tightly, on both code paths.
    for force_two_phase in (False, True):
        layer = CSMFusionTPU(pd_w, pd_b, P, spectral_mask,
                             compute_dtype=jnp.float32,
                             force_two_phase=force_two_phase)
        out = jax.block_until_ready(layer(x, weights))
        assert out.shape == (B, dim_out), f"Expected {(B, dim_out)}, got {out.shape}"
        assert jnp.allclose(out, ref, rtol=1e-4, atol=1e-3), (
            f"f32 Pallas kernel mismatch (two_phase={force_two_phase})")

    # bf16 MXU operands with f32 accumulation (default perf config): looser tolerance.
    for force_two_phase in (False, True):
        layer = CSMFusionTPU(pd_w, pd_b, P, spectral_mask,
                             compute_dtype=jnp.bfloat16,
                             force_two_phase=force_two_phase)
        out = jax.block_until_ready(layer(x, weights))
        assert out.shape == (B, dim_out), f"Expected {(B, dim_out)}, got {out.shape}"
        rel = jnp.linalg.norm(out - ref) / jnp.linalg.norm(ref)
        assert rel < 5e-2, (
            f"bf16 Pallas kernel mismatch (two_phase={force_two_phase}): rel={rel}")

    print("KERNEL_OK")
</pallas_src>

<mosaic_0001>
module attributes {stable_mosaic.version = 11 : i64} {
  func.func @_csm_small_kernel(%arg0: memref<8x32xf32, #tpu.memory_space<vmem>>, %arg1: memref<32x64xf32, #tpu.memory_space<vmem>>, %arg2: memref<64x32xf32, #tpu.memory_space<vmem>>, %arg3: memref<1x32xf32, #tpu.memory_space<vmem>>, %arg4: memref<32x32xf32, #tpu.memory_space<vmem>>, %arg5: memref<32x32xf32, #tpu.memory_space<vmem>>, %arg6: memref<32x32xf32, #tpu.memory_space<vmem>>, %arg7: memref<8x32xf32, #tpu.memory_space<vmem>>) attributes {dimension_semantics = [], scalar_prefetch = 0 : i64, scratch_operands = 0 : i64, tpu.core_type = #tpu.core_type<tc>} {
    %c0 = arith.constant 0 : index
    %c0_0 = arith.constant 0 : index
    %0 = vector.load %arg1[%c0, %c0_0] : memref<32x64xf32, #tpu.memory_space<vmem>>, vector<32x64xf32>
    %c0_1 = arith.constant 0 : index
    %c0_2 = arith.constant 0 : index
    %1 = vector.load %arg2[%c0_1, %c0_2] : memref<64x32xf32, #tpu.memory_space<vmem>>, vector<64x32xf32>
    %cst = arith.constant dense<0.000000e+00> : vector<32x32xf32>
    %2 = tpu.matmul %0, %1, %cst {dimension_numbers = #tpu.dot_dimension_numbers<[1], [0], [0], [1], [0, 0, 1, 1], [], []>} : vector<32x64xf32>, vector<64x32xf32>, vector<32x32xf32> -> vector<32x32xf32>
    %c0_3 = arith.constant 0 : index
    %c0_4 = arith.constant 0 : index
    %3 = vector.load %arg3[%c0_3, %c0_4] : memref<1x32xf32, #tpu.memory_space<vmem>>, vector<1x32xf32>
    %4 = vector.broadcast %3 : vector<1x32xf32> to vector<32x32xf32>
    %5 = arith.addf %2, %4 : vector<32x32xf32>
    %c0_5 = arith.constant 0 : index
    %c0_6 = arith.constant 0 : index
    %6 = vector.load %arg5[%c0_5, %c0_6] : memref<32x32xf32, #tpu.memory_space<vmem>>, vector<32x32xf32>
    %cst_7 = arith.constant dense<0.000000e+00> : vector<32x32xf32>
    %7 = tpu.matmul %6, %5, %cst_7 {dimension_numbers = #tpu.dot_dimension_numbers<[1], [0], [0], [1], [0, 0, 1, 1], [], []>} : vector<32x32xf32>, vector<32x32xf32>, vector<32x32xf32> -> vector<32x32xf32>
    %c0_8 = arith.constant 0 : index
    %c0_9 = arith.constant 0 : index
    %8 = vector.load %arg4[%c0_8, %c0_9] : memref<32x32xf32, #tpu.memory_space<vmem>>, vector<32x32xf32>
    %cst_10 = arith.constant dense<0.000000e+00> : vector<32x32xf32>
    %9 = tpu.matmul %7, %8, %cst_10 {dimension_numbers = #tpu.dot_dimension_numbers<[1], [0], [0], [1], [0, 0, 1, 1], [], []>} : vector<32x32xf32>, vector<32x32xf32>, vector<32x32xf32> -> vector<32x32xf32>
    %c0_11 = arith.constant 0 : index
    %c0_12 = arith.constant 0 : index
    %10 = vector.load %arg6[%c0_11, %c0_12] : memref<32x32xf32, #tpu.memory_space<vmem>>, vector<32x32xf32>
    %11 = arith.negf %10 : vector<32x32xf32>
    %12 = math.exp %11 : vector<32x32xf32>
    %cst_13 = arith.constant 1.000000e+00 : f32
    %13 = vector.broadcast %cst_13 : f32 to vector<32x32xf32>
    %14 = arith.addf %13, %12 : vector<32x32xf32>
    %15 = arith.divf %13, %14 : vector<32x32xf32>
    %16 = arith.mulf %9, %15 : vector<32x32xf32>
    %c0_14 = arith.constant 0 : index
    %c0_15 = arith.constant 0 : index
    %17 = vector.load %arg0[%c0_14, %c0_15] : memref<8x32xf32, #tpu.memory_space<vmem>>, vector<8x32xf32>
    %c0_16 = arith.constant 0 : index
    %c0_17 = arith.constant 0 : index
    %18 = vector.load %arg4[%c0_16, %c0_17] : memref<32x32xf32, #tpu.memory_space<vmem>>, vector<32x32xf32>
    %cst_18 = arith.constant dense<0.000000e+00> : vector<8x32xf32>
    %19 = tpu.matmul %17, %18, %cst_18 {dimension_numbers = #tpu.dot_dimension_numbers<[1], [0], [0], [1], [0, 0, 1, 1], [], []>} : vector<8x32xf32>, vector<32x32xf32>, vector<8x32xf32> -> vector<8x32xf32>
    %cst_19 = arith.constant dense<0.000000e+00> : vector<8x32xf32>
    %20 = tpu.matmul %19, %16, %cst_19 {dimension_numbers = #tpu.dot_dimension_numbers<[1], [1], [0], [0], [0, 0, 1, 0], [], []>} : vector<8x32xf32>, vector<32x32xf32>, vector<8x32xf32> -> vector<8x32xf32>
    %c0_20 = arith.constant 0 : index
    %c0_21 = arith.constant 0 : index
    %21 = vector.load %arg5[%c0_20, %c0_21] : memref<32x32xf32, #tpu.memory_space<vmem>>, vector<32x32xf32>
    %cst_22 = arith.constant dense<0.000000e+00> : vector<8x32xf32>
    %22 = tpu.matmul %20, %21, %cst_22 {dimension_numbers = #tpu.dot_dimension_numbers<[1], [0], [0], [1], [0, 0, 1, 1], [], []>} : vector<8x32xf32>, vector<32x32xf32>, vector<8x32xf32> -> vector<8x32xf32>
    %c0_23 = arith.constant 0 : index
    %c0_24 = arith.constant 0 : index
    %23 = vector.load %arg7[%c0_23, %c0_24] : memref<8x32xf32, #tpu.memory_space<vmem>>, vector<8x32xf32>
    tpu.vector_store %arg7[%c0_23, %c0_24], %22 {strides = array<i32>} : memref<8x32xf32, #tpu.memory_space<vmem>>, vector<8x32xf32>,
    return
  }
}

</mosaic_0001>

<llo_original>
// kernel: _csm_forward_small.1
$region0: #{_csm_forward_small.1}
  #allocation0 [shape = 'u32[]', space=smem, size = 0x4, offset = 0x4, fixed_abs, tag = 'smem constant byte address 0x4 - core index']
  #allocation1 [shape = 'u32[144,128]{1,0:T(1,128)}', space=vmem, size = 0x12000, scoped, tag = 'internal scratch']
  %s0 = inlined_call_operand.hbm [shape: f32[8,32], index: 0, kind: input, shape index: {}]
  %s1 = inlined_call_operand.vmem [shape: f32[32,64], index: 1, kind: input, shape index: {}]
  %s2 = inlined_call_operand.vmem [shape: f32[64,32], index: 2, kind: input, shape index: {}]
  %s3 = inlined_call_operand.vmem [shape: f32[1,32], index: 3, kind: input, shape index: {}]
  %s4 = inlined_call_operand.vmem [shape: f32[32,32], index: 4, kind: input, shape index: {}]
  %s5 = inlined_call_operand.vmem [shape: f32[32,32], index: 5, kind: input, shape index: {}]
  %s6 = inlined_call_operand.hbm [shape: f32[32,32], index: 6, kind: input, shape index: {}]
  %s7 = inlined_call_operand.hbm [shape: f32[8,32], index: 7, kind: output, shape index: {}]
  %s8 = sld [smem:[#allocation0]]
  $region46: #{_csm_forward_small.1} parent=0
    _
  %s10 = ssub.s32 1, %s8
  %s11 = scalar_select 0, %s10, %s8
  $region1: #{_csm_forward_small.1} parent=0
    #allocation2 [shape = 'u8[4096]{0}', space=vmem, size = 0x1000, scoped, tag = 'input window, operand 0, single buffered']
    #allocation3 [shape = 's32[1]{0}', space=sflag, size = 0x4, scoped, tag = 'scoped memory for _csm_forward_small.1']
    #allocation4 [shape = 's32[1]{0}', space=sflag, size = 0x4, scoped, tag = 'scoped memory for _csm_forward_small.1']
    #allocation5 [shape = 'u8[16384]{0}', space=vmem, size = 0x4000, scoped, tag = 'input window, operand 6, single buffered']
    #allocation6 [shape = 's32[1]{0}', space=sflag, size = 0x4, scoped, tag = 'scoped memory for _csm_forward_small.1']
    #allocation7 [shape = 'u8[4096]{0}', space=vmem, size = 0x1000, scoped, tag = 'output window, operand 0, single buffered']
    %12 = vsyncpa [#allocation3], 0
    %13 = vsyncpa [#allocation6], 0
    %14 = vsyncpa [#allocation4], 0
    // Predicated region
    $region2: #{_csm_forward_small.1} parent=1 // pred_check
      _
    $region3: #{_csm_forward_small.1} parent=1 // pred_check_branch
      %16 = sbr.rel (0) target = $region5
    $region4: #{_csm_forward_small.1} parent=1 // pred_region
      %s18 = ssub.s32 128, 128
      %19 = vsyncadd [#allocation3], %s18
      %s21 = sshll.u32 [#allocation2], 4
      %s22 = int_to_ptr.vmem [resolvable:$true] %s21
      %24 = dma.hbm_to_vmem [thread:$0]  %s0, 128, %s22, [#allocation3]
    $region5: #{_csm_forward_small.1} parent=1 // pred_fallthru
      _
    // Predicated region
    $region6: #{_csm_forward_small.1} parent=1 // pred_check
      _
    $region7: #{_csm_forward_small.1} parent=1 // pred_check_branch
      %26 = sbr.rel (0) target = $region9
    $region8: #{_csm_forward_small.1} parent=1 // pred_region
      _
    $region9: #{_csm_forward_small.1} parent=1 // pred_fallthru
      _
    // Predicated region
    $region10: #{_csm_forward_small.1} parent=1 // pred_check
      _
    $region11: #{_csm_forward_small.1} parent=1 // pred_check_branch
      %28 = sbr.rel (0) target = $region13
    $region12: #{_csm_forward_small.1} parent=1 // pred_region
      _
    $region13: #{_csm_forward_small.1} parent=1 // pred_fallthru
      _
    // Predicated region
    $region14: #{_csm_forward_small.1} parent=1 // pred_check
      _
    $region15: #{_csm_forward_small.1} parent=1 // pred_check_branch
      %30 = sbr.rel (0) target = $region17
    $region16: #{_csm_forward_small.1} parent=1 // pred_region
      _
    $region17: #{_csm_forward_small.1} parent=1 // pred_fallthru
      _
    // Predicated region
    $region18: #{_csm_forward_small.1} parent=1 // pred_check
      _
    $region19: #{_csm_forward_small.1} parent=1 // pred_check_branch
      %32 = sbr.rel (0) target = $region21
    $region20: #{_csm_forward_small.1} parent=1 // pred_region
      _
    $region21: #{_csm_forward_small.1} parent=1 // pred_fallthru
      _
    // Predicated region
    $region22: #{_csm_forward_small.1} parent=1 // pred_check
      _
    $region23: #{_csm_forward_small.1} parent=1 // pred_check_branch
      %34 = sbr.rel (0) target = $region25
    $region24: #{_csm_forward_small.1} parent=1 // pred_region
      _
    $region25: #{_csm_forward_small.1} parent=1 // pred_fallthru
      _
    // Predicated region
    $region26: #{_csm_forward_small.1} parent=1 // pred_check
      _
    $region27: #{_csm_forward_small.1} parent=1 // pred_check_branch
      %36 = sbr.rel (0) target = $region29
    $region28: #{_csm_forward_small.1} parent=1 // pred_region
      %s38 = ssub.s32 512, 512
      %39 = vsyncadd [#allocation6], %s38
      %s40 = sshll.u32 [#allocation5], 4
      %s41 = int_to_ptr.vmem [resolvable:$true] %s40
      %46 = dma.hbm_to_vmem [thread:$0]  %s6, 512, %s41, [#allocation6], 128, 128, 8
    $region29: #{_csm_forward_small.1} parent=1 // pred_fallthru
      _
    // Predicated region
    $region30: #{_csm_forward_small.1} parent=1 // pred_check
      _
    $region31: #{_csm_forward_small.1} parent=1 // pred_check_branch
      %48 = sbr.rel (0) target = $region33
    $region32: #{_csm_forward_small.1} parent=1 // pred_region
      %49 = dma.done [#allocation3], 128
    $region33: #{_csm_forward_small.1} parent=1 // pred_fallthru
      _
    // Predicated region
    $region34: #{_csm_forward_small.1} parent=1 // pred_check
      _
    $region35: #{_csm_forward_small.1} parent=1 // pred_check_branch
      %51 = sbr.rel (0) target = $region37
    $region36: #{_csm_forward_small.1} parent=1 // pred_region
      %52 = dma.done [#allocation6], 512
    $region37: #{_csm_forward_small.1} parent=1 // pred_fallthru
      _
    %v53 = vld [vmem:[%s1] sm:$0xff]
    %v54 = vld [vmem:[%s1 + $0x8] sm:$0xff]
    %v55 = vld [vmem:[%s1 + $0x10] sm:$0xff]
    %v56 = vld [vmem:[%s1 + $0x18] sm:$0xff]
    %v57 = vld [vmem:[%s2] sm:$0xff]
    %v58 = vld [vmem:[%s2 + $0x8] sm:$0xff]
    %v59 = vld [vmem:[%s2 + $0x10] sm:$0xff]
    %v60 = vld [vmem:[%s2 + $0x18] sm:$0xff]
    %v61 = vld [vmem:[%s2 + $0x20] sm:$0xff]
    %v62 = vld [vmem:[%s2 + $0x28] sm:$0xff]
    %v63 = vld [vmem:[%s2 + $0x30] sm:$0xff]
    %v64 = vld [vmem:[%s2 + $0x38] sm:$0xff]
    %v65 = vld [vmem:[%s3] sm:$0x1]
    %v67 = vlaneseq
    %v68 = vshrl.u32 %v67, 7
    %v69 = vsub.s32 0, %v68
    %v70 = vrot.slane %v65, %v69
    %vm72 = vcmask 523264
    %v74 = vsel %vm72, %v53, 0
    %v77 = vsel %vm72, %v54, 0
    %v80 = vsel %vm72, %v55, 0
    %v83 = vsel %vm72, %v56, 0
    %85 = vmatprep.subr.mxu0 0.0
    %86 = vmatpush1.msra.mxu0 %v57
    %87 = vmatprep.subr.mxu0 0.0
    %88 = vmatpush1.msra.mxu0 %v58
    %89 = vmatprep.subr.mxu0 0.0
    %90 = vmatpush1.msra.mxu0 %v59
    %91 = vmatprep.subr.mxu0 0.0
    %92 = vmatpush1.msra.mxu0 %v60
    %93 = vmatprep.subr.mxu0 0.0
    %94 = vmatpush1.msra.mxu0 %v61
    %95 = vmatprep.subr.mxu0 0.0
    %96 = vmatpush1.msra.mxu0 %v62
    %97 = vmatprep.subr.mxu0 0.0
    %98 = vmatpush1.msra.mxu0 %v63
    %99 = vmatprep.subr.mxu0 0.0
    %100 = vmatpush1.msra.mxu0 %v64
    %101 = vmatprep.subr.mxu0 0.0
    %102 = vmatpush1.msra.mxu0 0.0
    %103 = vmatprep.subr.mxu0 0.0
    %104 = vmatpush1.msra.mxu0 0.0
    %105 = vmatprep.subr.mxu0 0.0
    %106 = vmatpush1.msra.mxu0 0.0
    %107 = vmatprep.subr.mxu0 0.0
    %108 = vmatpush1.msra.mxu0 0.0
    %109 = vmatprep.subr.mxu0 0.0
    %110 = vmatpush1.msra.mxu0 0.0
    %111 = vmatprep.subr.mxu0 0.0
    %112 = vmatpush1.msra.mxu0 0.0
    %113 = vmatprep.subr.mxu0 0.0
    %114 = vmatpush1.msra.mxu0 0.0
    %115 = vmatprep.subr.mxu0 0.0
    %116 = vmatpush1.msra.mxu0 0.0
    %117 = vmatprep.subr.mxu0 0.0
    %118 = vmatpush1.msra.mxu0 0.0
    %119 = vmatprep.subr.mxu0 0.0
    %120 = vmatpush1.msra.mxu0 0.0
    %121 = vmatprep.subr.mxu0 0.0
    %122 = vmatpush1.msra.mxu0 0.0
    %123 = vmatprep.subr.mxu0 0.0
    %124 = vmatpush1.msra.mxu0 0.0
    %125 = vmatprep.subr.mxu0 0.0
    %126 = vmatpush1.msra.mxu0 0.0
    %127 = vmatprep.subr.mxu0 0.0
    %128 = vmatpush1.msra.mxu0 0.0
    %129 = vmatprep.subr.mxu0 0.0
    %130 = vmatpush1.msra.mxu0 0.0
    %131 = vmatprep.subr.mxu0 0.0
    %132 = vmatpush1.msra.mxu0 0.0
    %133 = vmatprep.subr.mxu0 0.0
    %134 = vmatpush1.msra.mxu0 0.0
    %135 = vmatprep.subr.mxu0 0.0
    %136 = vmatpush1.msra.mxu0 0.0
    %137 = vmatprep.subr.mxu0 0.0
    %138 = vmatpush1.msra.mxu0 0.0
    %139 = vmatprep.subr.mxu0 0.0
    %140 = vmatpush1.msra.mxu0 0.0
    %141 = vmatprep.subr.mxu0 0.0
    %142 = vmatpush1.msra.mxu0 0.0
    %143 = vmatprep.subr.mxu0 0.0
    %144 = vmatpush1.msra.mxu0 0.0
    %145 = vmatprep.subr.mxu0 0.0
    %146 = vmatpush1.msra.mxu0 0.0
    %147 = vmatprep.subr.mxu0 0.0
    %148 = vmatpush1.msra.mxu0 0.0
    %149 = vmatprep.mubr.f32.mxu0 0.0
    %150 = vmatmul.mubr.f32.gmra.mrb[0].mxu0 %v74
    %v151 = vpop.f32.mrb[0].mxu0
    %v152 = vadd.f32 %v70, %v151
    %v153 = vpop.f32.mrb[0].mxu0
    %154 = vmatprep.mubr.f32.mxu0 0.0
    %155 = vmatmul.mubr.f32.gmra.mrb[0].mxu0 %v77
    %v156 = vpop.f32.mrb[0].mxu0
    %v157 = vadd.f32 %v70, %v156
    %v158 = vpop.f32.mrb[0].mxu0
    %159 = vmatprep.mubr.f32.mxu0 0.0
    %160 = vmatmul.mubr.f32.gmra.mrb[0].mxu0 %v80
    %v161 = vpop.f32.mrb[0].mxu0
    %v162 = vadd.f32 %v70, %v161
    %v163 = vpop.f32.mrb[0].mxu0
    %164 = vmatprep.mubr.f32.mxu0 0.0
    %165 = vmatmul.mubr.f32.gmra.mrb[0].mxu0 %v83
    %v166 = vpop.f32.mrb[0].mxu0
    %v167 = vadd.f32 %v70, %v166
    %v168 = vpop.f32.mrb[0].mxu0
    %169 = vdwg.mxu0
    %v170 = vld [vmem:[%s5] sm:$0xff]
    %v171 = vld [vmem:[%s5 + $0x8] sm:$0xff]
    %v172 = vld [vmem:[%s5 + $0x10] sm:$0xff]
    %v173 = vld [vmem:[%s5 + $0x18] sm:$0xff]
    %vm174 = vcmask 261120
    %v176 = vsel %vm174, %v170, 0
    %v179 = vsel %vm174, %v171, 0
    %v182 = vsel %vm174, %v172, 0
    %v185 = vsel %vm174, %v173, 0
    %187 = vmatprep.subr.mxu0 0.0
    %188 = vmatpush1.msra.mxu0 %v152
    %189 = vmatprep.subr.mxu0 0.0
    %190 = vmatpush1.msra.mxu0 %v157
    %191 = vmatprep.subr.mxu0 0.0
    %192 = vmatpush1.msra.mxu0 %v162
    %193 = vmatprep.subr.mxu0 0.0
    %194 = vmatpush1.msra.mxu0 %v167
    %195 = vmatprep.subr.mxu0 0.0
    %196 = vmatpush1.msra.mxu0 0.0
    %197 = vmatprep.subr.mxu0 0.0
    %198 = vmatpush1.msra.mxu0 0.0
    %199 = vmatprep.subr.mxu0 0.0
    %200 = vmatpush1.msra.mxu0 0.0
    %201 = vmatprep.subr.mxu0 0.0
    %202 = vmatpush1.msra.mxu0 0.0
    %203 = vmatprep.subr.mxu0 0.0
    %204 = vmatpush1.msra.mxu0 0.0
    %205 = vmatprep.subr.mxu0 0.0
    %206 = vmatpush1.msra.mxu0 0.0
    %207 = vmatprep.subr.mxu0 0.0
    %208 = vmatpush1.msra.mxu0 0.0
    %209 = vmatprep.subr.mxu0 0.0
    %210 = vmatpush1.msra.mxu0 0.0
    %211 = vmatprep.subr.mxu0 0.0
    %212 = vmatpush1.msra.mxu0 0.0
    %213 = vmatprep.subr.mxu0 0.0
    %214 = vmatpush1.msra.mxu0 0.0
    %215 = vmatprep.subr.mxu0 0.0
    %216 = vmatpush1.msra.mxu0 0.0
    %217 = vmatprep.subr.mxu0 0.0
    %218 = vmatpush1.msra.mxu0 0.0
    %219 = vmatprep.subr.mxu0 0.0
    %220 = vmatpush1.msra.mxu0 0.0
    %221 = vmatprep.subr.mxu0 0.0
    %222 = vmatpush1.msra.mxu0 0.0
    %223 = vmatprep.subr.mxu0 0.0
    %224 = vmatpush1.msra.mxu0 0.0
    %225 = vmatprep.subr.mxu0 0.0
    %226 = vmatpush1.msra.mxu0 0.0
    %227 = vmatprep.subr.mxu0 0.0
    %228 = vmatpush1.msra.mxu0 0.0
    %229 = vmatprep.subr.mxu0 0.0
    %230 = vmatpush1.msra.mxu0 0.0
    %231 = vmatprep.subr.mxu0 0.0
    %232 = vmatpush1.msra.mxu0 0.0
    %233 = vmatprep.subr.mxu0 0.0
    %234 = vmatpush1.msra.mxu0 0.0
    %235 = vmatprep.subr.mxu0 0.0
    %236 = vmatpush1.msra.mxu0 0.0
    %237 = vmatprep.subr.mxu0 0.0
    %238 = vmatpush1.msra.mxu0 0.0
    %239 = vmatprep.subr.mxu0 0.0
    %240 = vmatpush1.msra.mxu0 0.0
    %241 = vmatprep.subr.mxu0 0.0
    %242 = vmatpush1.msra.mxu0 0.0
    %243 = vmatprep.subr.mxu0 0.0
    %244 = vmatpush1.msra.mxu0 0.0
    %245 = vmatprep.subr.mxu0 0.0
    %246 = vmatpush1.msra.mxu0 0.0
    %247 = vmatprep.subr.mxu0 0.0
    %248 = vmatpush1.msra.mxu0 0.0
    %249 = vmatprep.subr.mxu0 0.0
    %250 = vmatpush1.msra.mxu0 0.0
    %251 = vmatprep.mubr.f32.mxu0 0.0
    %252 = vmatmul.mubr.f32.gmra.mrb[0].mxu0 %v176
    %v253 = vpop.f32.mrb[0].mxu0
    %v254 = vadd.f32 0.0, %v253
    %v255 = vpop.f32.mrb[0].mxu0
    %256 = vmatprep.mubr.f32.mxu0 0.0
    %257 = vmatmul.mubr.f32.gmra.mrb[0].mxu0 %v179
    %v258 = vpop.f32.mrb[0].mxu0
    %v259 = vadd.f32 0.0, %v258
    %v260 = vpop.f32.mrb[0].mxu0
    %261 = vmatprep.mubr.f32.mxu0 0.0
    %262 = vmatmul.mubr.f32.gmra.mrb[0].mxu0 %v182
    %v263 = vpop.f32.mrb[0].mxu0
    %v264 = vadd.f32 0.0, %v263
    %v265 = vpop.f32.mrb[0].mxu0
    %266 = vmatprep.mubr.f32.mxu0 0.0
    %267 = vmatmul.mubr.f32.gmra.mrb[0].mxu0 %v185
    %v268 = vpop.f32.mrb[0].mxu0
    %v269 = vadd.f32 0.0, %v268
    %v270 = vpop.f32.mrb[0].mxu0
    %271 = vdwg.mxu0
    %v272 = vld [vmem:[%s4] sm:$0xff]
    %v273 = vld [vmem:[%s4 + $0x8] sm:$0xff]
    %v274 = vld [vmem:[%s4 + $0x10] sm:$0xff]
    %v275 = vld [vmem:[%s4 + $0x18] sm:$0xff]
    %v277 = vsel %vm174, %v254, 0
    %v280 = vsel %vm174, %v259, 0
    %v283 = vsel %vm174, %v264, 0
    %v286 = vsel %vm174, %v269, 0
    %288 = vmatprep.subr.mxu0 0.0
    %289 = vmatpush1.msra.mxu0 %v272
    %290 = vmatprep.subr.mxu0 0.0
    %291 = vmatpush1.msra.mxu0 %v273
    %292 = vmatprep.subr.mxu0 0.0
    %293 = vmatpush1.msra.mxu0 %v274
    %294 = vmatprep.subr.mxu0 0.0
    %295 = vmatpush1.msra.mxu0 %v275
    %296 = vmatprep.subr.mxu0 0.0
    %297 = vmatpush1.msra.mxu0 0.0
    %298 = vmatprep.subr.mxu0 0.0
    %299 = vmatpush1.msra.mxu0 0.0
    %300 = vmatprep.subr.mxu0 0.0
    %301 = vmatpush1.msra.mxu0 0.0
    %302 = vmatprep.subr.mxu0 0.0
    %303 = vmatpush1.msra.mxu0 0.0
    %304 = vmatprep.subr.mxu0 0.0
    %305 = vmatpush1.msra.mxu0 0.0
    %306 = vmatprep.subr.mxu0 0.0
    %307 = vmatpush1.msra.mxu0 0.0
    %308 = vmatprep.subr.mxu0 0.0
    %309 = vmatpush1.msra.mxu0 0.0
    %310 = vmatprep.subr.mxu0 0.0
    %311 = vmatpush1.msra.mxu0 0.0
    %312 = vmatprep.subr.mxu0 0.0
    %313 = vmatpush1.msra.mxu0 0.0
    %314 = vmatprep.subr.mxu0 0.0
    %315 = vmatpush1.msra.mxu0 0.0
    %316 = vmatprep.subr.mxu0 0.0
    %317 = vmatpush1.msra.mxu0 0.0
    %318 = vmatprep.subr.mxu0 0.0
    %319 = vmatpush1.msra.mxu0 0.0
    %320 = vmatprep.subr.mxu0 0.0
    %321 = vmatpush1.msra.mxu0 0.0
    %322 = vmatprep.subr.mxu0 0.0
    %323 = vmatpush1.msra.mxu0 0.0
    %324 = vmatprep.subr.mxu0 0.0
    %325 = vmatpush1.msra.mxu0 0.0
    %326 = vmatprep.subr.mxu0 0.0
    %327 = vmatpush1.msra.mxu0 0.0
    %328 = vmatprep.subr.mxu0 0.0
    %329 = vmatpush1.msra.mxu0 0.0
    %330 = vmatprep.subr.mxu0 0.0
    %331 = vmatpush1.msra.mxu0 0.0
    %332 = vmatprep.subr.mxu0 0.0
    %333 = vmatpush1.msra.mxu0 0.0
    %334 = vmatprep.subr.mxu0 0.0
    %335 = vmatpush1.msra.mxu0 0.0
    %336 = vmatprep.subr.mxu0 0.0
    %337 = vmatpush1.msra.mxu0 0.0
    %338 = vmatprep.subr.mxu0 0.0
    %339 = vmatpush1.msra.mxu0 0.0
    %340 = vmatprep.subr.mxu0 0.0
    %341 = vmatpush1.msra.mxu0 0.0
    %342 = vmatprep.subr.mxu0 0.0
    %343 = vmatpush1.msra.mxu0 0.0
    %344 = vmatprep.subr.mxu0 0.0
    %345 = vmatpush1.msra.mxu0 0.0
    %346 = vmatprep.subr.mxu0 0.0
    %347 = vmatpush1.msra.mxu0 0.0
    %348 = vmatprep.subr.mxu0 0.0
    %349 = vmatpush1.msra.mxu0 0.0
    %350 = vmatprep.subr.mxu0 0.0
    %351 = vmatpush1.msra.mxu0 0.0
    %352 = vmatprep.mubr.f32.mxu0 0.0
    %353 = vmatmul.mubr.f32.gmra.mrb[0].mxu0 %v277
    %v354 = vpop.f32.mrb[0].mxu0
    %v355 = vadd.f32 0.0, %v354
    %v356 = vpop.f32.mrb[0].mxu0
    %357 = vmatprep.mubr.f32.mxu0 0.0
    %358 = vmatmul.mubr.f32.gmra.mrb[0].mxu0 %v280
    %v359 = vpop.f32.mrb[0].mxu0
    %v360 = vadd.f32 0.0, %v359
    %v361 = vpop.f32.mrb[0].mxu0
    %362 = vmatprep.mubr.f32.mxu0 0.0
    %363 = vmatmul.mubr.f32.gmra.mrb[0].mxu0 %v283
    %v364 = vpop.f32.mrb[0].mxu0
    %v365 = vadd.f32 0.0, %v364
    %v366 = vpop.f32.mrb[0].mxu0
    %367 = vmatprep.mubr.f32.mxu0 0.0
    %368 = vmatmul.mubr.f32.gmra.mrb[0].mxu0 %v286
    %v369 = vpop.f32.mrb[0].mxu0
    %v370 = vadd.f32 0.0, %v369
    %v371 = vpop.f32.mrb[0].mxu0
    %372 = vdwg.mxu0
    %v373 = vld [vmem:[#allocation5] sm:$0xff]
    %v374 = vld [vmem:[#allocation5 + $0x8] sm:$0xff]
    %v375 = vld [vmem:[#allocation5 + $0x10] sm:$0xff]
    %v376 = vld [vmem:[#allocation5 + $0x18] sm:$0xff]
    %v377 = vxor.u32 %v373, 2147483648
    %v378 = vxor.u32 %v374, 2147483648
    %v379 = vxor.u32 %v375, 2147483648
    %v380 = vxor.u32 %v376, 2147483648
    %v381 = vmul.f32 %v377, 1.442695
    %v382 = vpow.pop %v381
    %v383 = vmul.f32 %v378, 1.442695
    %v384 = vpow.pop %v383
    %v385 = vmul.f32 %v379, 1.442695
    %v386 = vpow.pop %v385
    %v387 = vmul.f32 %v380, 1.442695
    %v388 = vpow.pop %v387
    %v389 = vadd.f32 %v382, 1.0
    %v390 = vadd.f32 %v384, 1.0
    %v391 = vadd.f32 %v386, 1.0
    %v392 = vadd.f32 %v388, 1.0
    %v393 = vrcp.pop %v389
    %v394 = vmul.f32 1.0, %v393
    %v395 = vrcp.pop %v390
    %v396 = vmul.f32 1.0, %v395
    %v397 = vrcp.pop %v391
    %v398 = vmul.f32 1.0, %v397
    %v399 = vrcp.pop %v392
    %v400 = vmul.f32 1.0, %v399
    %v401 = vmul.f32 %v355, %v394
    %v402 = vmul.f32 %v360, %v396
    %v403 = vmul.f32 %v365, %v398
    %v404 = vmul.f32 %v370, %v400
    %v405 = vld [vmem:[#allocation2] sm:$0xff]
    %v407 = vsel %vm174, %v405, 0
    %409 = vmatprep.subr.mxu0 0.0
    %410 = vmatpush1.msra.mxu0 %v272
    %411 = vmatprep.subr.mxu0 0.0
    %412 = vmatpush1.msra.mxu0 %v273
    %413 = vmatprep.subr.mxu0 0.0
    %414 = vmatpush1.msra.mxu0 %v274
    %415 = vmatprep.subr.mxu0 0.0
    %416 = vmatpush1.msra.mxu0 %v275
    %417 = vmatprep.subr.mxu0 0.0
    %418 = vmatpush1.msra.mxu0 0.0
    %419 = vmatprep.subr.mxu0 0.0
    %420 = vmatpush1.msra.mxu0 0.0
    %421 = vmatprep.subr.mxu0 0.0
    %422 = vmatpush1.msra.mxu0 0.0
    %423 = vmatprep.subr.mxu0 0.0
    %424 = vmatpush1.msra.mxu0 0.0
    %425 = vmatprep.subr.mxu0 0.0
    %426 = vmatpush1.msra.mxu0 0.0
    %427 = vmatprep.subr.mxu0 0.0
    %428 = vmatpush1.msra.mxu0 0.0
    %429 = vmatprep.subr.mxu0 0.0
    %430 = vmatpush1.msra.mxu0 0.0
    %431 = vmatprep.subr.mxu0 0.0
    %432 = vmatpush1.msra.mxu0 0.0
    %433 = vmatprep.subr.mxu0 0.0
    %434 = vmatpush1.msra.mxu0 0.0
    %435 = vmatprep.subr.mxu0 0.0
    %436 = vmatpush1.msra.mxu0 0.0
    %437 = vmatprep.subr.mxu0 0.0
    %438 = vmatpush1.msra.mxu0 0.0
    %439 = vmatprep.subr.mxu0 0.0
    %440 = vmatpush1.msra.mxu0 0.0
    %441 = vmatprep.subr.mxu0 0.0
    %442 = vmatpush1.msra.mxu0 0.0
    %443 = vmatprep.subr.mxu0 0.0
    %444 = vmatpush1.msra.mxu0 0.0
    %445 = vmatprep.subr.mxu0 0.0
    %446 = vmatpush1.msra.mxu0 0.0
    %447 = vmatprep.subr.mxu0 0.0
    %448 = vmatpush1.msra.mxu0 0.0
    %449 = vmatprep.subr.mxu0 0.0
    %450 = vmatpush1.msra.mxu0 0.0
    %451 = vmatprep.subr.mxu0 0.0
    %452 = vmatpush1.msra.mxu0 0.0
    %453 = vmatprep.subr.mxu0 0.0
    %454 = vmatpush1.msra.mxu0 0.0
    %455 = vmatprep.subr.mxu0 0.0
    %456 = vmatpush1.msra.mxu0 0.0
    %457 = vmatprep.subr.mxu0 0.0
    %458 = vmatpush1.msra.mxu0 0.0
    %459 = vmatprep.subr.mxu0 0.0
    %460 = vmatpush1.msra.mxu0 0.0
    %461 = vmatprep.subr.mxu0 0.0
    %462 = vmatpush1.msra.mxu0 0.0
    %463 = vmatprep.subr.mxu0 0.0
    %464 = vmatpush1.msra.mxu0 0.0
    %465 = vmatprep.subr.mxu0 0.0
    %466 = vmatpush1.msra.mxu0 0.0
    %467 = vmatprep.subr.mxu0 0.0
    %468 = vmatpush1.msra.mxu0 0.0
    %469 = vmatprep.subr.mxu0 0.0
    %470 = vmatpush1.msra.mxu0 0.0
    %471 = vmatprep.subr.mxu0 0.0
    %472 = vmatpush1.msra.mxu0 0.0
    %473 = vmatprep.mubr.f32.mxu0 0.0
    %474 = vmatmul.mubr.f32.gmra.mrb[0].mxu0 %v407
    %v475 = vpop.f32.mrb[0].mxu0
    %v476 = vadd.f32 0.0, %v475
    %v477 = vpop.f32.mrb[0].mxu0
    %478 = vdwg.mxu0
    %v480 = vsel %vm174, %v476, 0
    %v483 = vsel %vm174, %v401, 0
    %v486 = vsel %vm174, %v402, 0
    %v489 = vsel %vm174, %v403, 0
    %v492 = vsel %vm174, %v404, 0
    %494 = vmatprep.subr.mxu0 0.0
    %495 = vmatpush1.xpose.msra.mxu0 %v483
    %496 = vmatprep.subr.mxu0 0.0
    %497 = vmatpush1.xpose.msra.mxu0 %v486
    %498 = vmatprep.subr.mxu0 0.0
    %499 = vmatpush1.xpose.msra.mxu0 %v489
    %500 = vmatprep.subr.mxu0 0.0
    %501 = vmatpush1.xpose.msra.mxu0 %v492
    %502 = vmatprep.subr.mxu0 0.0
    %503 = vmatpush1.xpose.msra.mxu0 0.0
    %504 = vmatprep.subr.mxu0 0.0
    %505 = vmatpush1.xpose.msra.mxu0 0.0
    %506 = vmatprep.subr.mxu0 0.0
    %507 = vmatpush1.xpose.msra.mxu0 0.0
    %508 = vmatprep.subr.mxu0 0.0
    %509 = vmatpush1.xpose.msra.mxu0 0.0
    %510 = vmatprep.subr.mxu0 0.0
    %511 = vmatpush1.xpose.msra.mxu0 0.0
    %512 = vmatprep.subr.mxu0 0.0
    %513 = vmatpush1.xpose.msra.mxu0 0.0
    %514 = vmatprep.subr.mxu0 0.0
    %515 = vmatpush1.xpose.msra.mxu0 0.0
    %516 = vmatprep.subr.mxu0 0.0
    %517 = vmatpush1.xpose.msra.mxu0 0.0
    %518 = vmatprep.subr.mxu0 0.0
    %519 = vmatpush1.xpose.msra.mxu0 0.0
    %520 = vmatprep.subr.mxu0 0.0
    %521 = vmatpush1.xpose.msra.mxu0 0.0
    %522 = vmatprep.subr.mxu0 0.0
    %523 = vmatpush1.xpose.msra.mxu0 0.0
    %524 = vmatprep.subr.mxu0 0.0
    %525 = vmatpush1.xpose.msra.mxu0 0.0
    %526 = vmatprep.subr.mxu0 0.0
    %527 = vmatpush1.xpose.msra.mxu0 0.0
    %528 = vmatprep.subr.mxu0 0.0
    %529 = vmatpush1.xpose.msra.mxu0 0.0
    %530 = vmatprep.subr.mxu0 0.0
    %531 = vmatpush1.xpose.msra.mxu0 0.0
    %532 = vmatprep.subr.mxu0 0.0
    %533 = vmatpush1.xpose.msra.mxu0 0.0
    %534 = vmatprep.subr.mxu0 0.0
    %535 = vmatpush1.xpose.msra.mxu0 0.0
    %536 = vmatprep.subr.mxu0 0.0
    %537 = vmatpush1.xpose.msra.mxu0 0.0
    %538 = vmatprep.subr.mxu0 0.0
    %539 = vmatpush1.xpose.msra.mxu0 0.0
    %540 = vmatprep.subr.mxu0 0.0
    %541 = vmatpush1.xpose.msra.mxu0 0.0
    %542 = vmatprep.subr.mxu0 0.0
    %543 = vmatpush1.xpose.msra.mxu0 0.0
    %544 = vmatprep.subr.mxu0 0.0
    %545 = vmatpush1.xpose.msra.mxu0 0.0
    %546 = vmatprep.subr.mxu0 0.0
    %547 = vmatpush1.xpose.msra.mxu0 0.0
    %548 = vmatprep.subr.mxu0 0.0
    %549 = vmatpush1.xpose.msra.mxu0 0.0
    %550 = vmatprep.subr.mxu0 0.0
    %551 = vmatpush1.xpose.msra.mxu0 0.0
    %552 = vmatprep.subr.mxu0 0.0
    %553 = vmatpush1.xpose.msra.mxu0 0.0
    %554 = vmatprep.subr.mxu0 0.0
    %555 = vmatpush1.xpose.msra.mxu0 0.0
    %556 = vmatprep.subr.mxu0 0.0
    %557 = vmatpush1.xpose.msra.mxu0 0.0
    %558 = vmatprep.mubr.f32.mxu0 0.0
    %559 = vmatmul.mubr.f32.gmra.mrb[0].mxu0 %v480
    %v560 = vpop.f32.mrb[0].mxu0
    %v561 = vadd.f32 0.0, %v560
    %v562 = vpop.f32.mrb[0].mxu0
    %563 = vdwg.mxu0
    %v565 = vsel %vm174, %v561, 0
    %567 = vmatprep.subr.mxu0 0.0
    %568 = vmatpush1.msra.mxu0 %v170
    %569 = vmatprep.subr.mxu0 0.0
    %570 = vmatpush1.msra.mxu0 %v171
    %571 = vmatprep.subr.mxu0 0.0
    %572 = vmatpush1.msra.mxu0 %v172
    %573 = vmatprep.subr.mxu0 0.0
    %574 = vmatpush1.msra.mxu0 %v173
    %575 = vmatprep.subr.mxu0 0.0
    %576 = vmatpush1.msra.mxu0 0.0
    %577 = vmatprep.subr.mxu0 0.0
    %578 = vmatpush1.msra.mxu0 0.0
    %579 = vmatprep.subr.mxu0 0.0
    %580 = vmatpush1.msra.mxu0 0.0
    %581 = vmatprep.subr.mxu0 0.0
    %582 = vmatpush1.msra.mxu0 0.0
    %583 = vmatprep.subr.mxu0 0.0
    %584 = vmatpush1.msra.mxu0 0.0
    %585 = vmatprep.subr.mxu0 0.0
    %586 = vmatpush1.msra.mxu0 0.0
    %587 = vmatprep.subr.mxu0 0.0
    %588 = vmatpush1.msra.mxu0 0.0
    %589 = vmatprep.subr.mxu0 0.0
    %590 = vmatpush1.msra.mxu0 0.0
    %591 = vmatprep.subr.mxu0 0.0
    %592 = vmatpush1.msra.mxu0 0.0
    %593 = vmatprep.subr.mxu0 0.0
    %594 = vmatpush1.msra.mxu0 0.0
    %595 = vmatprep.subr.mxu0 0.0
    %596 = vmatpush1.msra.mxu0 0.0
    %597 = vmatprep.subr.mxu0 0.0
    %598 = vmatpush1.msra.mxu0 0.0
    %599 = vmatprep.subr.mxu0 0.0
    %600 = vmatpush1.msra.mxu0 0.0
    %601 = vmatprep.subr.mxu0 0.0
    %602 = vmatpush1.msra.mxu0 0.0
    %603 = vmatprep.subr.mxu0 0.0
    %604 = vmatpush1.msra.mxu0 0.0
    %605 = vmatprep.subr.mxu0 0.0
    %606 = vmatpush1.msra.mxu0 0.0
    %607 = vmatprep.subr.mxu0 0.0
    %608 = vmatpush1.msra.mxu0 0.0
    %609 = vmatprep.subr.mxu0 0.0
    %610 = vmatpush1.msra.mxu0 0.0
    %611 = vmatprep.subr.mxu0 0.0
    %612 = vmatpush1.msra.mxu0 0.0
    %613 = vmatprep.subr.mxu0 0.0
    %614 = vmatpush1.msra.mxu0 0.0
    %615 = vmatprep.subr.mxu0 0.0
    %616 = vmatpush1.msra.mxu0 0.0
    %617 = vmatprep.subr.mxu0 0.0
    %618 = vmatpush1.msra.mxu0 0.0
    %619 = vmatprep.subr.mxu0 0.0
    %620 = vmatpush1.msra.mxu0 0.0
    %621 = vmatprep.subr.mxu0 0.0
    %622 = vmatpush1.msra.mxu0 0.0
    %623 = vmatprep.subr.mxu0 0.0
    %624 = vmatpush1.msra.mxu0 0.0
    %625 = vmatprep.subr.mxu0 0.0
    %626 = vmatpush1.msra.mxu0 0.0
    %627 = vmatprep.subr.mxu0 0.0
    %628 = vmatpush1.msra.mxu0 0.0
    %629 = vmatprep.subr.mxu0 0.0
    %630 = vmatpush1.msra.mxu0 0.0
    %631 = vmatprep.mubr.f32.mxu0 0.0
    %632 = vmatmul.mubr.f32.gmra.mrb[0].mxu0 %v565
    %v633 = vpop.f32.mrb[0].mxu0
    %v634 = vadd.f32 0.0, %v633
    %v635 = vpop.f32.mrb[0].mxu0
    %636 = vdwg.mxu0
    %637 = vst.msk [vmem:[#allocation7] sm:$0xff] %vm174, %v634
    // Predicated region
    $region38: #{_csm_forward_small.1} parent=1 // pred_check
      _
    $region39: #{_csm_forward_small.1} parent=1 // pred_check_branch
      %639 = sbr.rel (0) target = $region41
    $region40: #{_csm_forward_small.1} parent=1 // pred_region
      %s641 = ssub.s32 128, 128
      %642 = vsyncadd [#allocation4], %s641
      %s644 = sshll.u32 [#allocation7], 4
      %s645 = int_to_ptr.vmem [resolvable:$true] %s644
      %647 = dma.vmem_to_hbm [thread:$0]  %s645, 128, %s7, [#allocation4]
    $region41: #{_csm_forward_small.1} parent=1 // pred_fallthru
      _
    // Predicated region
    $region42: #{_csm_forward_small.1} parent=1 // pred_check
      _
    $region43: #{_csm_forward_small.1} parent=1 // pred_check_branch
      %649 = sbr.rel (0) target = $region45
    $region44: #{_csm_forward_small.1} parent=1 // pred_region
      %650 = dma.done [#allocation4], 128
    $region45: #{_csm_forward_small.1} parent=1 // pred_fallthru
      _
    %651 = vsyncpa [#allocation3], 1
    %652 = vsyncpa [#allocation6], 1
    %653 = vsyncpa [#allocation4], 1

</llo_original>
